<compile_context>
chip_gen: v5e
topology: v5e:2x2
jax: 0.10.0
libtpu: 0.0.40
codegen_flags: <defaults>
</compile_context>

<pallas_src>
import functools

import jax
import jax.numpy as jnp
import numpy as np
from jax.experimental import pallas as pl
from jax.experimental.pallas import tpu as pltpu

EPS = 1e-5
MXU_DTYPE = jnp.bfloat16   # native full-rate MXU operand format (f32 accumulate)
ACT_DTYPE = jnp.bfloat16   # inter-pass activations stored in HBM


def _round_up(v, m):
    return (v + m - 1) // m * m


def _tap_masks_and_shifts(h, w, lane_len):
    """Static per-tap boundary masks (9, H*W) and lane-roll amounts (mod lane_len)."""
    hw = h * w
    hh, ww = np.meshgrid(np.arange(h), np.arange(w), indexing="ij")
    masks = np.zeros((9, hw), np.float32)
    shifts = []
    for dy in range(3):
        for dx in range(3):
            ddy, ddx = dy - 1, dx - 1
            valid = ((hh + ddy >= 0) & (hh + ddy < h) &
                     (ww + ddx >= 0) & (ww + ddx < w))
            masks[dy * 3 + dx] = valid.astype(np.float32).reshape(-1)
            # rolled[j] == x[(j + ddy*W + ddx) mod lane_len]; the mask zeroes every
            # position whose neighbour falls outside its own image, so wraps across
            # image boundaries inside the lane slab contribute nothing.
            shifts.append(int((-(ddy * w + ddx)) % lane_len))
    return masks, tuple(shifts)


def _images_per_step(n, c_pad, hw):
    """Lane-batch as many images per grid step as possible while keeping
    >= 2 grid steps (v7x has two TensorCores) and a modest VMEM footprint."""
    if n <= 1:
        return 1
    best = 1
    for imgs in range(1, n // 2 + 1):
        if n % imgs:
            continue
        lanes = imgs * hw
        # rough per-step bytes: double-buffered bf16 in/out blocks + f32 tap regs
        approx = 2 * 2 * (2 * c_pad * lanes) * 2 + 10 * c_pad * lanes * 4
        if approx <= 8 * 1024 * 1024:
            best = imgs
    return best


def _conv_stats_kernel(x_ref, masks_ref, w_ref, scale_ref, shift_ref,
                       y_ref, stats_ref, *, shifts, bn_relu_input):
    """One lane slab: [folded BN+ReLU] -> 3x3 conv as ONE MXU matmul -> stats."""
    x = x_ref[0].astype(jnp.float32)                     # (C_in_p, L)
    if bn_relu_input:                                    # folded BN + ReLU
        x = jnp.maximum(x * scale_ref[...] + shift_ref[...], 0.0)

    # im2col patch built fully in registers: 9 XLU rolls + static boundary masks,
    # concatenated at 8-row (sublane-tile) aligned offsets -> no scratch round-trip.
    masks = masks_ref[...]                               # (9, L) f32 {0, 1}
    taps = []
    for t, s in enumerate(shifts):
        tap = pltpu.roll(x, shift=s, axis=1) if s else x
        taps.append(tap * masks[t:t + 1, :])
    patch = jnp.concatenate(taps, axis=0).astype(w_ref.dtype)   # (9*C_in_p, L)

    # Single lane-dense MXU contraction: (C_out_p, 9*C_in_p) x (9*C_in_p, L).
    y = jnp.dot(w_ref[...], patch, preferred_element_type=jnp.float32)

    y_ref[0] = y.astype(y_ref.dtype)
    # Exact per-step, per-channel sums from the f32 accumulator (before the bf16
    # cast), packed into ONE sublane-aligned (2*C_out_p, 1) output block.
    ssum = jnp.sum(y, axis=1, keepdims=True)
    ssq = jnp.sum(y * y, axis=1, keepdims=True)
    stats_ref[0] = jnp.concatenate([ssum, ssq], axis=0)


def _conv_pass(x_slab, masks, w_mat, scale, shift, shifts, *, bn_relu_input):
    """Grid over lane slabs: conv (+ optional folded input BN/ReLU) + stats."""
    steps, c_in_p, lanes = x_slab.shape
    c_out_p = w_mat.shape[0]
    kernel = functools.partial(_conv_stats_kernel, shifts=shifts,
                               bn_relu_input=bn_relu_input)

    def fixed(shape):
        return pl.BlockSpec(shape, lambda i: (0,) * len(shape))

    return pl.pallas_call(
        kernel,
        out_shape=(jax.ShapeDtypeStruct((steps, c_out_p, lanes), ACT_DTYPE),
                   jax.ShapeDtypeStruct((steps, 2 * c_out_p, 1), jnp.float32)),
        grid=(steps,),
        in_specs=[pl.BlockSpec((1, c_in_p, lanes), lambda i: (i, 0, 0)),
                  fixed(masks.shape), fixed(w_mat.shape),
                  fixed(scale.shape), fixed(shift.shape)],
        out_specs=(pl.BlockSpec((1, c_out_p, lanes), lambda i: (i, 0, 0)),
                   pl.BlockSpec((1, 2 * c_out_p, 1), lambda i: (i, 0, 0))),
        compiler_params=pltpu.CompilerParams(
            dimension_semantics=("parallel",)),
    )(x_slab, masks, w_mat, scale, shift)


def _bn_affine(stats, gamma, beta, count):
    """Fold exact batch statistics + learned affine into per-channel (scale, shift)."""
    c = gamma.shape[0]
    s = jnp.sum(stats[:, :c, 0], axis=0)          # (C,)
    q = jnp.sum(stats[:, c:, 0], axis=0)          # (C,)
    mean = s / count
    var = q / count - mean * mean                 # biased, as PyTorch training BN
    scale = gamma * jax.lax.rsqrt(var + EPS)
    shift = beta - mean * scale
    return scale.reshape(-1, 1), shift.reshape(-1, 1)


@jax.jit
def double_conv(x_nchw, params):
    """x: (N, Cin, H, W) f32 -> (N, Cout, H, W) f32 (PyTorch DoubleConv forward)."""
    w1, b1, g1, be1, w2, b2, g2, be2 = params
    del b1, b2    # pre-BN conv bias is cancelled exactly by BN mean subtraction
    n, c_in, h, w = x_nchw.shape
    c_out = w1.shape[3]
    hw = h * w
    # TODO(synk): lane layout assumes H*W is a multiple of 128; other resolutions
    # need lane padding + mask adjustment in the wrapper.
    c_in_p = _round_up(c_in, 8)     # sublane-align channels so the in-register tap
    c_out_p = _round_up(c_out, 8)   # concat and every main load/store are aligned

    imgs = _images_per_step(n, max(c_in_p, c_out_p), hw)
    steps = n // imgs
    lanes = imgs * hw

    masks_np, shifts = _tap_masks_and_shifts(h, w, lanes)
    masks = jnp.asarray(np.tile(masks_np, (1, imgs)))            # (9, lanes)

    # Slab layout (steps, C, imgs*HW): lane axis carries imgs*H*W positions.
    x = jnp.pad(x_nchw.astype(jnp.float32),
                ((0, 0), (0, c_in_p - c_in), (0, 0), (0, 0)))
    x_slab = (x.reshape(steps, imgs, c_in_p, hw)
               .transpose(0, 2, 1, 3)
               .reshape(steps, c_in_p, lanes)
               .astype(ACT_DTYPE))

    def pack_w(wk, ci, ci_p, co, co_p):
        # HWIO (3,3,ci,co) -> (co_p, 9*ci_p); tap-major columns, zero padded.
        wk = jnp.pad(wk, ((0, 0), (0, 0), (0, ci_p - ci), (0, co_p - co)))
        return wk.reshape(9 * ci_p, co_p).T.astype(MXU_DTYPE)

    def pad_c(v, cp):
        return jnp.pad(v.astype(jnp.float32), (0, cp - v.shape[0]))

    w1m = pack_w(w1, c_in, c_in_p, c_out, c_out_p)
    w2m = pack_w(w2, c_out, c_out_p, c_out, c_out_p)
    g1p, be1p = pad_c(g1, c_out_p), pad_c(be1, c_out_p)
    g2p, be2p = pad_c(g2, c_out_p), pad_c(be2, c_out_p)

    # Pass 1: conv1 + per-step channel stats (affine inputs unused -> dummies).
    dummy = jnp.zeros((c_in_p, 1), jnp.float32)
    y1, st1 = _conv_pass(x_slab, masks, w1m, dummy, dummy, shifts,
                         bn_relu_input=False)
    scale1, shift1 = _bn_affine(st1, g1p, be1p, n * hw)

    # Pass 2: folded BN1 + ReLU -> conv2 + stats.
    y2, st2 = _conv_pass(y1, masks, w2m, scale1, shift1, shifts,
                         bn_relu_input=True)
    scale2, shift2 = _bn_affine(st2, g2p, be2p, n * hw)

    # BN2 + ReLU: tiny elementwise tail, left to XLA so it fuses with the
    # un-slabbing reshape/transpose (no third pallas_call).
    out = jnp.maximum(y2.astype(jnp.float32) * scale2[None] + shift2[None], 0.0)
    out = (out.reshape(steps, c_out_p, imgs, hw)
              .transpose(0, 2, 1, 3)
              .reshape(n, c_out_p, h, w))
    return out[:, :c_out]


def ref_double_conv(x, params):
    """Pure-JAX/XLA f32 reference (NCHW) with identical semantics, for validation."""
    w1, b1, g1, be1, w2, b2, g2, be2 = params

    def conv(x, w, b):
        y = jax.lax.conv_general_dilated(
            x, w, window_strides=(1, 1), padding=((1, 1), (1, 1)),
            dimension_numbers=('NCHW', 'HWIO', 'NCHW'),
            precision=jax.lax.Precision.HIGHEST)
        return y + b[None, :, None, None]

    def bn_relu(y, g, be):
        mean = y.mean(axis=(0, 2, 3), keepdims=True)
        var = ((y - mean) ** 2).mean(axis=(0, 2, 3), keepdims=True)
        y = (y - mean) / jnp.sqrt(var + EPS) * g[None, :, None, None] \
            + be[None, :, None, None]
        return jnp.maximum(y, 0.0)

    y = bn_relu(conv(x, w1, b1), g1, be1)
    y = bn_relu(conv(y, w2, b2), g2, be2)
    return y


if __name__ == "__main__":
    key = jax.random.PRNGKey(0)
    N, Cin, Cout, H, W = 2, 4, 8, 16, 16

    ks = jax.random.split(key, 7)
    x = jax.random.normal(ks[0], (N, Cin, H, W), jnp.float32)

    # Conv weights in HWIO layout (3, 3, Cin, Cout).
    w1 = 0.1 * jax.random.normal(ks[1], (3, 3, Cin, Cout), jnp.float32)
    b1 = 0.1 * jax.random.normal(ks[2], (Cout,), jnp.float32)
    w2 = 0.1 * jax.random.normal(ks[3], (3, 3, Cout, Cout), jnp.float32)
    b2 = 0.1 * jax.random.normal(ks[4], (Cout,), jnp.float32)
    # BatchNorm affine params (gamma ~1, beta = 0).
    g1 = 1.0 + 0.1 * jax.random.normal(ks[5], (Cout,), jnp.float32)
    be1 = jnp.zeros((Cout,), jnp.float32)
    g2 = 1.0 + 0.1 * jax.random.normal(ks[6], (Cout,), jnp.float32)
    be2 = jnp.zeros((Cout,), jnp.float32)

    params = (w1, b1, g1, be1, w2, b2, g2, be2)

    out = jax.block_until_ready(double_conv(x, params))
    ref = jax.block_until_ready(ref_double_conv(x, params))

    assert out.shape == (N, Cout, H, W)
    # bf16 MXU operands + bf16 inter-pass activations -> validate against the
    # f32 reference with a correspondingly loose tolerance.
    assert jnp.allclose(out, ref, atol=5e-2, rtol=5e-2), \
        f"max abs diff {jnp.max(jnp.abs(out - ref))}"

    print("KERNEL_OK")
</pallas_src>

<mosaic_0001>
module attributes {stable_mosaic.version = 11 : i64} {
  func.func @_conv_stats_kernel(%arg0: i32, %arg1: memref<1x8x256xbf16, #tpu.memory_space<vmem>>, %arg2: memref<9x256xf32, #tpu.memory_space<vmem>>, %arg3: memref<8x72xbf16, #tpu.memory_space<vmem>>, %arg4: memref<8x1xf32, #tpu.memory_space<vmem>>, %arg5: memref<8x1xf32, #tpu.memory_space<vmem>>, %arg6: memref<1x8x256xbf16, #tpu.memory_space<vmem>>, %arg7: memref<1x16x1xf32, #tpu.memory_space<vmem>>) attributes {dimension_semantics = [#tpu.dimension_semantics<parallel>], iteration_bounds = array<i64: 2>, scalar_prefetch = 0 : i64, scratch_operands = 0 : i64, tpu.core_type = #tpu.core_type<tc>, window_params = [{transform_indices = @transform_0, window_bounds = array<i64: 1, 8, 256>}, {pipeline_mode = #tpu.pipeline_mode<synchronous>, transform_indices = @transform_1, window_bounds = array<i64: 9, 256>}, {pipeline_mode = #tpu.pipeline_mode<synchronous>, transform_indices = @transform_2, window_bounds = array<i64: 8, 72>}, {pipeline_mode = #tpu.pipeline_mode<synchronous>, transform_indices = @transform_3, window_bounds = array<i64: 8, 1>}, {pipeline_mode = #tpu.pipeline_mode<synchronous>, transform_indices = @transform_4, window_bounds = array<i64: 8, 1>}, {transform_indices = @transform_5, window_bounds = array<i64: 1, 8, 256>}, {transform_indices = @transform_6, window_bounds = array<i64: 1, 16, 1>}]} {
    %c0 = arith.constant 0 : index
    %c0_0 = arith.constant 0 : index
    %c0_1 = arith.constant 0 : index
    %0 = vector.load %arg1[%c0, %c0_0, %c0_1] : memref<1x8x256xbf16, #tpu.memory_space<vmem>>, vector<1x8x256xbf16>
    %1 = vector.shape_cast %0 : vector<1x8x256xbf16> to vector<8x256xbf16>
    %2 = arith.extf %1 : vector<8x256xbf16> to vector<8x256xf32>
    %c0_2 = arith.constant 0 : index
    %c0_3 = arith.constant 0 : index
    %3 = vector.load %arg2[%c0_2, %c0_3] : memref<9x256xf32, #tpu.memory_space<vmem>>, vector<9x256xf32>
    %c17_i32 = arith.constant 17 : i32
    %4 = tpu.dynamic_rotate %2 by %c17_i32 dim 1 : vector<8x256xf32>, i32 -> vector<8x256xf32>
    %5 = vector.extract_strided_slice %3 {offsets = [0, 0], sizes = [1, 256], strides = [1, 1]} : vector<9x256xf32> to vector<1x256xf32>
    %6 = vector.broadcast %5 : vector<1x256xf32> to vector<8x256xf32>
    %7 = arith.mulf %4, %6 : vector<8x256xf32>
    %c16_i32 = arith.constant 16 : i32
    %8 = tpu.dynamic_rotate %2 by %c16_i32 dim 1 : vector<8x256xf32>, i32 -> vector<8x256xf32>
    %9 = vector.extract_strided_slice %3 {offsets = [1, 0], sizes = [1, 256], strides = [1, 1]} : vector<9x256xf32> to vector<1x256xf32>
    %10 = vector.broadcast %9 : vector<1x256xf32> to vector<8x256xf32>
    %11 = arith.mulf %8, %10 : vector<8x256xf32>
    %c15_i32 = arith.constant 15 : i32
    %12 = tpu.dynamic_rotate %2 by %c15_i32 dim 1 : vector<8x256xf32>, i32 -> vector<8x256xf32>
    %13 = vector.extract_strided_slice %3 {offsets = [2, 0], sizes = [1, 256], strides = [1, 1]} : vector<9x256xf32> to vector<1x256xf32>
    %14 = vector.broadcast %13 : vector<1x256xf32> to vector<8x256xf32>
    %15 = arith.mulf %12, %14 : vector<8x256xf32>
    %c1_i32 = arith.constant 1 : i32
    %16 = tpu.dynamic_rotate %2 by %c1_i32 dim 1 : vector<8x256xf32>, i32 -> vector<8x256xf32>
    %17 = vector.extract_strided_slice %3 {offsets = [3, 0], sizes = [1, 256], strides = [1, 1]} : vector<9x256xf32> to vector<1x256xf32>
    %18 = vector.broadcast %17 : vector<1x256xf32> to vector<8x256xf32>
    %19 = arith.mulf %16, %18 : vector<8x256xf32>
    %20 = vector.extract_strided_slice %3 {offsets = [4, 0], sizes = [1, 256], strides = [1, 1]} : vector<9x256xf32> to vector<1x256xf32>
    %21 = vector.broadcast %20 : vector<1x256xf32> to vector<8x256xf32>
    %22 = arith.mulf %2, %21 : vector<8x256xf32>
    %c255_i32 = arith.constant 255 : i32
    %23 = tpu.dynamic_rotate %2 by %c255_i32 dim 1 : vector<8x256xf32>, i32 -> vector<8x256xf32>
    %24 = vector.extract_strided_slice %3 {offsets = [5, 0], sizes = [1, 256], strides = [1, 1]} : vector<9x256xf32> to vector<1x256xf32>
    %25 = vector.broadcast %24 : vector<1x256xf32> to vector<8x256xf32>
    %26 = arith.mulf %23, %25 : vector<8x256xf32>
    %c241_i32 = arith.constant 241 : i32
    %27 = tpu.dynamic_rotate %2 by %c241_i32 dim 1 : vector<8x256xf32>, i32 -> vector<8x256xf32>
    %28 = vector.extract_strided_slice %3 {offsets = [6, 0], sizes = [1, 256], strides = [1, 1]} : vector<9x256xf32> to vector<1x256xf32>
    %29 = vector.broadcast %28 : vector<1x256xf32> to vector<8x256xf32>
    %30 = arith.mulf %27, %29 : vector<8x256xf32>
    %c240_i32 = arith.constant 240 : i32
    %31 = tpu.dynamic_rotate %2 by %c240_i32 dim 1 : vector<8x256xf32>, i32 -> vector<8x256xf32>
    %32 = vector.extract_strided_slice %3 {offsets = [7, 0], sizes = [1, 256], strides = [1, 1]} : vector<9x256xf32> to vector<1x256xf32>
    %33 = vector.broadcast %32 : vector<1x256xf32> to vector<8x256xf32>
    %34 = arith.mulf %31, %33 : vector<8x256xf32>
    %c239_i32 = arith.constant 239 : i32
    %35 = tpu.dynamic_rotate %2 by %c239_i32 dim 1 : vector<8x256xf32>, i32 -> vector<8x256xf32>
    %36 = vector.extract_strided_slice %3 {offsets = [8, 0], sizes = [1, 256], strides = [1, 1]} : vector<9x256xf32> to vector<1x256xf32>
    %37 = vector.broadcast %36 : vector<1x256xf32> to vector<8x256xf32>
    %38 = arith.mulf %35, %37 : vector<8x256xf32>
    %39 = tpu.concatenate %7, %11, %15, %19, %22, %26, %30, %34, %38 in 0 : vector<8x256xf32>, vector<8x256xf32>, vector<8x256xf32>, vector<8x256xf32>, vector<8x256xf32>, vector<8x256xf32>, vector<8x256xf32>, vector<8x256xf32>, vector<8x256xf32> -> vector<72x256xf32>
    %40 = arith.truncf %39 : vector<72x256xf32> to vector<72x256xbf16>
    %c0_4 = arith.constant 0 : index
    %c0_5 = arith.constant 0 : index
    %41 = vector.load %arg3[%c0_4, %c0_5] : memref<8x72xbf16, #tpu.memory_space<vmem>>, vector<8x72xbf16>
    %cst = arith.constant dense<0.000000e+00> : vector<8x256xf32>
    %42 = tpu.matmul %41, %40, %cst {dimension_numbers = #tpu.dot_dimension_numbers<[1], [0], [0], [1], [0, 0, 1, 1], [], []>} : vector<8x72xbf16>, vector<72x256xbf16>, vector<8x256xf32> -> vector<8x256xf32>
    %43 = arith.truncf %42 : vector<8x256xf32> to vector<8x256xbf16>
    %c0_6 = arith.constant 0 : index
    %c0_7 = arith.constant 0 : index
    %c0_8 = arith.constant 0 : index
    %44 = vector.load %arg6[%c0_6, %c0_7, %c0_8] : memref<1x8x256xbf16, #tpu.memory_space<vmem>>, vector<1x8x256xbf16>
    %45 = vector.shape_cast %44 : vector<1x8x256xbf16> to vector<8x256xbf16>
    %46 = vector.shape_cast %43 : vector<8x256xbf16> to vector<1x8x256xbf16>
    tpu.vector_store %arg6[%c0_6, %c0_7, %c0_8], %46 {strides = array<i32>} : memref<1x8x256xbf16, #tpu.memory_space<vmem>>, vector<1x8x256xbf16>,
    %cst_9 = arith.constant dense<0.000000e+00> : vector<8xf32>
    %47 = vector.multi_reduction <add>, %42, %cst_9 [1] : vector<8x256xf32> to vector<8xf32>
    %48 = vector.shape_cast %47 : vector<8xf32> to vector<8x1xf32>
    %49 = arith.mulf %42, %42 : vector<8x256xf32>
    %cst_10 = arith.constant dense<0.000000e+00> : vector<8xf32>
    %50 = vector.multi_reduction <add>, %49, %cst_10 [1] : vector<8x256xf32> to vector<8xf32>
    %51 = vector.shape_cast %50 : vector<8xf32> to vector<8x1xf32>
    %52 = tpu.concatenate %48, %51 in 0 : vector<8x1xf32>, vector<8x1xf32> -> vector<16x1xf32>
    %c0_11 = arith.constant 0 : index
    %c0_12 = arith.constant 0 : index
    %c0_13 = arith.constant 0 : index
    %53 = vector.load %arg7[%c0_11, %c0_12, %c0_13] : memref<1x16x1xf32, #tpu.memory_space<vmem>>, vector<1x16x1xf32>
    %54 = vector.shape_cast %53 : vector<1x16x1xf32> to vector<16x1xf32>
    %55 = vector.shape_cast %52 : vector<16x1xf32> to vector<1x16x1xf32>
    tpu.vector_store %arg7[%c0_11, %c0_12, %c0_13], %55 {strides = array<i32>} : memref<1x16x1xf32, #tpu.memory_space<vmem>>, vector<1x16x1xf32>,
    return
  }
  func.func @transform_0(%arg0: i32) -> (i32, i32, i32) {
    %c0_i32 = arith.constant 0 : i32
    %c0_i32_0 = arith.constant 0 : i32
    %c0_i32_1 = arith.constant 0 : i32
    return %arg0, %c0_i32, %c0_i32_0 : i32, i32, i32
  }
  func.func @transform_1(%arg0: i32) -> (i32, i32) {
    %c0_i32 = arith.constant 0 : i32
    %c0_i32_0 = arith.constant 0 : i32
    %c0_i32_1 = arith.constant 0 : i32
    return %c0_i32, %c0_i32_0 : i32, i32
  }
  func.func @transform_2(%arg0: i32) -> (i32, i32) {
    %c0_i32 = arith.constant 0 : i32
    %c0_i32_0 = arith.constant 0 : i32
    %c0_i32_1 = arith.constant 0 : i32
    return %c0_i32, %c0_i32_0 : i32, i32
  }
  func.func @transform_3(%arg0: i32) -> (i32, i32) {
    %c0_i32 = arith.constant 0 : i32
    %c0_i32_0 = arith.constant 0 : i32
    %c0_i32_1 = arith.constant 0 : i32
    return %c0_i32, %c0_i32_0 : i32, i32
  }
  func.func @transform_4(%arg0: i32) -> (i32, i32) {
    %c0_i32 = arith.constant 0 : i32
    %c0_i32_0 = arith.constant 0 : i32
    %c0_i32_1 = arith.constant 0 : i32
    return %c0_i32, %c0_i32_0 : i32, i32
  }
  func.func @transform_5(%arg0: i32) -> (i32, i32, i32) {
    %c0_i32 = arith.constant 0 : i32
    %c0_i32_0 = arith.constant 0 : i32
    %c0_i32_1 = arith.constant 0 : i32
    return %arg0, %c0_i32, %c0_i32_0 : i32, i32, i32
  }
  func.func @transform_6(%arg0: i32) -> (i32, i32, i32) {
    %c0_i32 = arith.constant 0 : i32
    %c0_i32_0 = arith.constant 0 : i32
    %c0_i32_1 = arith.constant 0 : i32
    return %arg0, %c0_i32, %c0_i32_0 : i32, i32, i32
  }
}

module attributes {stable_mosaic.version = 11 : i64} {
  func.func @_conv_stats_kernel(%arg0: i32, %arg1: memref<1x8x256xbf16, #tpu.memory_space<vmem>>, %arg2: memref<9x256xf32, #tpu.memory_space<vmem>>, %arg3: memref<8x72xbf16, #tpu.memory_space<vmem>>, %arg4: memref<8x1xf32, #tpu.memory_space<vmem>>, %arg5: memref<8x1xf32, #tpu.memory_space<vmem>>, %arg6: memref<1x8x256xbf16, #tpu.memory_space<vmem>>, %arg7: memref<1x16x1xf32, #tpu.memory_space<vmem>>) attributes {dimension_semantics = [#tpu.dimension_semantics<parallel>], iteration_bounds = array<i64: 2>, scalar_prefetch = 0 : i64, scratch_operands = 0 : i64, tpu.core_type = #tpu.core_type<tc>, window_params = [{transform_indices = @transform_0, window_bounds = array<i64: 1, 8, 256>}, {pipeline_mode = #tpu.pipeline_mode<synchronous>, transform_indices = @transform_1, window_bounds = array<i64: 9, 256>}, {pipeline_mode = #tpu.pipeline_mode<synchronous>, transform_indices = @transform_2, window_bounds = array<i64: 8, 72>}, {pipeline_mode = #tpu.pipeline_mode<synchronous>, transform_indices = @transform_3, window_bounds = array<i64: 8, 1>}, {pipeline_mode = #tpu.pipeline_mode<synchronous>, transform_indices = @transform_4, window_bounds = array<i64: 8, 1>}, {transform_indices = @transform_5, window_bounds = array<i64: 1, 8, 256>}, {transform_indices = @transform_6, window_bounds = array<i64: 1, 16, 1>}]} {
    %c0 = arith.constant 0 : index
    %c0_0 = arith.constant 0 : index
    %c0_1 = arith.constant 0 : index
    %0 = vector.load %arg1[%c0, %c0_0, %c0_1] : memref<1x8x256xbf16, #tpu.memory_space<vmem>>, vector<1x8x256xbf16>
    %1 = vector.shape_cast %0 : vector<1x8x256xbf16> to vector<8x256xbf16>
    %2 = arith.extf %1 : vector<8x256xbf16> to vector<8x256xf32>
    %c0_2 = arith.constant 0 : index
    %c0_3 = arith.constant 0 : index
    %3 = vector.load %arg4[%c0_2, %c0_3] : memref<8x1xf32, #tpu.memory_space<vmem>>, vector<8x1xf32>
    %4 = vector.broadcast %3 : vector<8x1xf32> to vector<8x256xf32>
    %5 = arith.mulf %2, %4 : vector<8x256xf32>
    %c0_4 = arith.constant 0 : index
    %c0_5 = arith.constant 0 : index
    %6 = vector.load %arg5[%c0_4, %c0_5] : memref<8x1xf32, #tpu.memory_space<vmem>>, vector<8x1xf32>
    %7 = vector.broadcast %6 : vector<8x1xf32> to vector<8x256xf32>
    %8 = arith.addf %5, %7 : vector<8x256xf32>
    %cst = arith.constant 0.000000e+00 : f32
    %9 = vector.broadcast %cst : f32 to vector<8x256xf32>
    %10 = arith.maximumf %8, %9 : vector<8x256xf32>
    %c0_6 = arith.constant 0 : index
    %c0_7 = arith.constant 0 : index
    %11 = vector.load %arg2[%c0_6, %c0_7] : memref<9x256xf32, #tpu.memory_space<vmem>>, vector<9x256xf32>
    %c17_i32 = arith.constant 17 : i32
    %12 = tpu.dynamic_rotate %10 by %c17_i32 dim 1 : vector<8x256xf32>, i32 -> vector<8x256xf32>
    %13 = vector.extract_strided_slice %11 {offsets = [0, 0], sizes = [1, 256], strides = [1, 1]} : vector<9x256xf32> to vector<1x256xf32>
    %14 = vector.broadcast %13 : vector<1x256xf32> to vector<8x256xf32>
    %15 = arith.mulf %12, %14 : vector<8x256xf32>
    %c16_i32 = arith.constant 16 : i32
    %16 = tpu.dynamic_rotate %10 by %c16_i32 dim 1 : vector<8x256xf32>, i32 -> vector<8x256xf32>
    %17 = vector.extract_strided_slice %11 {offsets = [1, 0], sizes = [1, 256], strides = [1, 1]} : vector<9x256xf32> to vector<1x256xf32>
    %18 = vector.broadcast %17 : vector<1x256xf32> to vector<8x256xf32>
    %19 = arith.mulf %16, %18 : vector<8x256xf32>
    %c15_i32 = arith.constant 15 : i32
    %20 = tpu.dynamic_rotate %10 by %c15_i32 dim 1 : vector<8x256xf32>, i32 -> vector<8x256xf32>
    %21 = vector.extract_strided_slice %11 {offsets = [2, 0], sizes = [1, 256], strides = [1, 1]} : vector<9x256xf32> to vector<1x256xf32>
    %22 = vector.broadcast %21 : vector<1x256xf32> to vector<8x256xf32>
    %23 = arith.mulf %20, %22 : vector<8x256xf32>
    %c1_i32 = arith.constant 1 : i32
    %24 = tpu.dynamic_rotate %10 by %c1_i32 dim 1 : vector<8x256xf32>, i32 -> vector<8x256xf32>
    %25 = vector.extract_strided_slice %11 {offsets = [3, 0], sizes = [1, 256], strides = [1, 1]} : vector<9x256xf32> to vector<1x256xf32>
    %26 = vector.broadcast %25 : vector<1x256xf32> to vector<8x256xf32>
    %27 = arith.mulf %24, %26 : vector<8x256xf32>
    %28 = vector.extract_strided_slice %11 {offsets = [4, 0], sizes = [1, 256], strides = [1, 1]} : vector<9x256xf32> to vector<1x256xf32>
    %29 = vector.broadcast %28 : vector<1x256xf32> to vector<8x256xf32>
    %30 = arith.mulf %10, %29 : vector<8x256xf32>
    %c255_i32 = arith.constant 255 : i32
    %31 = tpu.dynamic_rotate %10 by %c255_i32 dim 1 : vector<8x256xf32>, i32 -> vector<8x256xf32>
    %32 = vector.extract_strided_slice %11 {offsets = [5, 0], sizes = [1, 256], strides = [1, 1]} : vector<9x256xf32> to vector<1x256xf32>
    %33 = vector.broadcast %32 : vector<1x256xf32> to vector<8x256xf32>
    %34 = arith.mulf %31, %33 : vector<8x256xf32>
    %c241_i32 = arith.constant 241 : i32
    %35 = tpu.dynamic_rotate %10 by %c241_i32 dim 1 : vector<8x256xf32>, i32 -> vector<8x256xf32>
    %36 = vector.extract_strided_slice %11 {offsets = [6, 0], sizes = [1, 256], strides = [1, 1]} : vector<9x256xf32> to vector<1x256xf32>
    %37 = vector.broadcast %36 : vector<1x256xf32> to vector<8x256xf32>
    %38 = arith.mulf %35, %37 : vector<8x256xf32>
    %c240_i32 = arith.constant 240 : i32
    %39 = tpu.dynamic_rotate %10 by %c240_i32 dim 1 : vector<8x256xf32>, i32 -> vector<8x256xf32>
    %40 = vector.extract_strided_slice %11 {offsets = [7, 0], sizes = [1, 256], strides = [1, 1]} : vector<9x256xf32> to vector<1x256xf32>
    %41 = vector.broadcast %40 : vector<1x256xf32> to vector<8x256xf32>
    %42 = arith.mulf %39, %41 : vector<8x256xf32>
    %c239_i32 = arith.constant 239 : i32
    %43 = tpu.dynamic_rotate %10 by %c239_i32 dim 1 : vector<8x256xf32>, i32 -> vector<8x256xf32>
    %44 = vector.extract_strided_slice %11 {offsets = [8, 0], sizes = [1, 256], strides = [1, 1]} : vector<9x256xf32> to vector<1x256xf32>
    %45 = vector.broadcast %44 : vector<1x256xf32> to vector<8x256xf32>
    %46 = arith.mulf %43, %45 : vector<8x256xf32>
    %47 = tpu.concatenate %15, %19, %23, %27, %30, %34, %38, %42, %46 in 0 : vector<8x256xf32>, vector<8x256xf32>, vector<8x256xf32>, vector<8x256xf32>, vector<8x256xf32>, vector<8x256xf32>, vector<8x256xf32>, vector<8x256xf32>, vector<8x256xf32> -> vector<72x256xf32>
    %48 = arith.truncf %47 : vector<72x256xf32> to vector<72x256xbf16>
    %c0_8 = arith.constant 0 : index
    %c0_9 = arith.constant 0 : index
    %49 = vector.load %arg3[%c0_8, %c0_9] : memref<8x72xbf16, #tpu.memory_space<vmem>>, vector<8x72xbf16>
    %cst_10 = arith.constant dense<0.000000e+00> : vector<8x256xf32>
    %50 = tpu.matmul %49, %48, %cst_10 {dimension_numbers = #tpu.dot_dimension_numbers<[1], [0], [0], [1], [0, 0, 1, 1], [], []>} : vector<8x72xbf16>, vector<72x256xbf16>, vector<8x256xf32> -> vector<8x256xf32>
    %51 = arith.truncf %50 : vector<8x256xf32> to vector<8x256xbf16>
    %c0_11 = arith.constant 0 : index
    %c0_12 = arith.constant 0 : index
    %c0_13 = arith.constant 0 : index
    %52 = vector.load %arg6[%c0_11, %c0_12, %c0_13] : memref<1x8x256xbf16, #tpu.memory_space<vmem>>, vector<1x8x256xbf16>
    %53 = vector.shape_cast %52 : vector<1x8x256xbf16> to vector<8x256xbf16>
    %54 = vector.shape_cast %51 : vector<8x256xbf16> to vector<1x8x256xbf16>
    tpu.vector_store %arg6[%c0_11, %c0_12, %c0_13], %54 {strides = array<i32>} : memref<1x8x256xbf16, #tpu.memory_space<vmem>>, vector<1x8x256xbf16>,
    %cst_14 = arith.constant dense<0.000000e+00> : vector<8xf32>
    %55 = vector.multi_reduction <add>, %50, %cst_14 [1] : vector<8x256xf32> to vector<8xf32>
    %56 = vector.shape_cast %55 : vector<8xf32> to vector<8x1xf32>
    %57 = arith.mulf %50, %50 : vector<8x256xf32>
    %cst_15 = arith.constant dense<0.000000e+00> : vector<8xf32>
    %58 = vector.multi_reduction <add>, %57, %cst_15 [1] : vector<8x256xf32> to vector<8xf32>
    %59 = vector.shape_cast %58 : vector<8xf32> to vector<8x1xf32>
    %60 = tpu.concatenate %56, %59 in 0 : vector<8x1xf32>, vector<8x1xf32> -> vector<16x1xf32>
    %c0_16 = arith.constant 0 : index
    %c0_17 = arith.constant 0 : index
    %c0_18 = arith.constant 0 : index
    %61 = vector.load %arg7[%c0_16, %c0_17, %c0_18] : memref<1x16x1xf32, #tpu.memory_space<vmem>>, vector<1x16x1xf32>
    %62 = vector.shape_cast %61 : vector<1x16x1xf32> to vector<16x1xf32>
    %63 = vector.shape_cast %60 : vector<16x1xf32> to vector<1x16x1xf32>
    tpu.vector_store %arg7[%c0_16, %c0_17, %c0_18], %63 {strides = array<i32>} : memref<1x16x1xf32, #tpu.memory_space<vmem>>, vector<1x16x1xf32>,
    return
  }
  func.func @transform_0(%arg0: i32) -> (i32, i32, i32) {
    %c0_i32 = arith.constant 0 : i32
    %c0_i32_0 = arith.constant 0 : i32
    %c0_i32_1 = arith.constant 0 : i32
    return %arg0, %c0_i32, %c0_i32_0 : i32, i32, i32
  }
  func.func @transform_1(%arg0: i32) -> (i32, i32) {
    %c0_i32 = arith.constant 0 : i32
    %c0_i32_0 = arith.constant 0 : i32
    %c0_i32_1 = arith.constant 0 : i32
    return %c0_i32, %c0_i32_0 : i32, i32
  }
  func.func @transform_2(%arg0: i32) -> (i32, i32) {
    %c0_i32 = arith.constant 0 : i32
    %c0_i32_0 = arith.constant 0 : i32
    %c0_i32_1 = arith.constant 0 : i32
    return %c0_i32, %c0_i32_0 : i32, i32
  }
  func.func @transform_3(%arg0: i32) -> (i32, i32) {
    %c0_i32 = arith.constant 0 : i32
    %c0_i32_0 = arith.constant 0 : i32
    %c0_i32_1 = arith.constant 0 : i32
    return %c0_i32, %c0_i32_0 : i32, i32
  }
  func.func @transform_4(%arg0: i32) -> (i32, i32) {
    %c0_i32 = arith.constant 0 : i32
    %c0_i32_0 = arith.constant 0 : i32
    %c0_i32_1 = arith.constant 0 : i32
    return %c0_i32, %c0_i32_0 : i32, i32
  }
  func.func @transform_5(%arg0: i32) -> (i32, i32, i32) {
    %c0_i32 = arith.constant 0 : i32
    %c0_i32_0 = arith.constant 0 : i32
    %c0_i32_1 = arith.constant 0 : i32
    return %arg0, %c0_i32, %c0_i32_0 : i32, i32, i32
  }
  func.func @transform_6(%arg0: i32) -> (i32, i32, i32) {
    %c0_i32 = arith.constant 0 : i32
    %c0_i32_0 = arith.constant 0 : i32
    %c0_i32_1 = arith.constant 0 : i32
    return %arg0, %c0_i32, %c0_i32_0 : i32, i32, i32
  }
}

</mosaic_0001>

<llo_original>
// kernel: double_conv.2
$region0: #{double_conv.2}
  #allocation0 [shape = 'u32[]', space=smem, size = 0x4, offset = 0x4, fixed_abs, tag = 'smem constant byte address 0x4 - core index']
  #allocation1 [shape = 'u32[72,128]{1,0:T(1,128)}', space=vmem, size = 0x9000, scoped, tag = 'internal scratch']
  %s0 = inlined_call_operand.vmem [shape: bf16[2,8,256], index: 0, kind: input, shape index: {}]
  %s1 = inlined_call_operand.vmem [shape: f32[9,256], index: 1, kind: input, shape index: {}]
  %s2 = inlined_call_operand.vmem [shape: bf16[8,72], index: 2, kind: input, shape index: {}]
  %s3 = inlined_call_operand.vmem [shape: f32[8,1], index: 3, kind: input, shape index: {}, may-alias: {3,4}]
  %s4 = inlined_call_operand.vmem [shape: f32[8,1], index: 4, kind: input, shape index: {}, may-alias: {3,4}]
  %s5 = inlined_call_operand.vmem [shape: bf16[2,8,256], index: 5, kind: output, shape index: {0}]
  %s6 = inlined_call_operand.vmem [shape: f32[2,16,1], index: 6, kind: output, shape index: {1}]
  %7 = xla_tuple %s5, %s6
  %s8 = sld [smem:[#allocation0]]
  $region61: #{double_conv.2} parent=0
    _
  %s10 = ssub.s32 1, %s8
  %s11 = scalar_select 0, %s10, %s8
  loop: start=0, step=1, limit=4
  $region2: #{double_conv.2} parent=0 // loop_pre_header
    _
  $region3: #{double_conv.2} parent=0 // loop_header
    %s13 = sphi 0, %s17
    %p14 = scmp.ge.s32.totalorder %s13, 4
    %s23 = sphi 0, %s25
    %s26 = sphi 0, %s23
    %s27 = sphi 0, %s26
    %s43 = sphi 0, %s27
    %s47 = sphi 0, %s47
    %s49 = sphi 0, %s47
    %s50 = sphi 0, %s49
    %s64 = sphi 0, %s50
    %s68 = sphi 0, %s68
    %s70 = sphi 0, %s68
    %s71 = sphi 0, %s70
    %s85 = sphi 0, %s71
    %s89 = sphi 0, %s89
    %s91 = sphi 0, %s89
    %s92 = sphi 0, %s91
    %s106 = sphi 0, %s92
    %s110 = sphi 0, %s110
    %s112 = sphi 0, %s110
    %s113 = sphi 0, %s112
    %s127 = sphi 0, %s113
    %s133 = sphi 0, %s135
    %s136 = sphi 0, %s133
    %s137 = sphi 0, %s136
    %s153 = sphi 0, %s137
    %s159 = sphi 0, %s161
    %s162 = sphi 0, %s159
    %s163 = sphi 0, %s162
    %s179 = sphi 0, %s163
  $region4: #{double_conv.2} parent=0 // loop_header_branch
    %16 = sbr.rel (%p14) target = $region8
  $region5: #{double_conv.2} parent=0 // loop_body
    %s18 = ssub.s32 %s13, 1
    %s19 = ssub.s32 %s13, 2
    %s20 = sadd.s32 %s13, 1
    %s21 = ssub.s32 %s13, %s20
    %p22 = scmp.eq.s32.totalorder %s21, 0
    %s24 = sadd.s32 %s23, 1
    %s25 = scalar_select %p22, %s23, %s24
    %p28 = pneg %p22
    %p29 = scmp.eq.s32.totalorder %s13, 1
    %p30 = por %p28, %p29
    %p31 = scmp.ne.s32.totalorder %s23, %s26
    %p32 = scmp.eq.s32.totalorder %s13, 0
    %p33 = por %p31, %p32
    %p34 = scmp.ne.s32.totalorder %s23, %s26
    %p35 = scmp.eq.s32.totalorder %s18, 1
    %p36 = por %p34, %p35
    %p37 = scmp.ne.s32.totalorder %s26, %s27
    %p38 = scmp.eq.s32.totalorder %s18, 0
    %p39 = por %p37, %p38
    %p40 = scmp.ne.s32.totalorder %s26, %s27
    %p41 = scmp.eq.s32.totalorder %s19, 1
    %p42 = por %p40, %p41
    %p44 = scmp.ne.s32.totalorder %s27, %s43
    %p45 = scmp.eq.s32.totalorder %s19, 0
    %p46 = por %p44, %p45
    %s48 = sadd.s32 %s47, 1
    %p51 = scmp.eq.s32.totalorder %s13, 1
    %p52 = scmp.ne.s32.totalorder %s47, %s49
    %p53 = scmp.eq.s32.totalorder %s13, 0
    %p54 = por %p52, %p53
    %p55 = scmp.ne.s32.totalorder %s47, %s49
    %p56 = scmp.eq.s32.totalorder %s18, 1
    %p57 = por %p55, %p56
    %p58 = scmp.ne.s32.totalorder %s49, %s50
    %p59 = scmp.eq.s32.totalorder %s18, 0
    %p60 = por %p58, %p59
    %p61 = scmp.ne.s32.totalorder %s49, %s50
    %p62 = scmp.eq.s32.totalorder %s19, 1
    %p63 = por %p61, %p62
    %p65 = scmp.ne.s32.totalorder %s50, %s64
    %p66 = scmp.eq.s32.totalorder %s19, 0
    %p67 = por %p65, %p66
    %s69 = sadd.s32 %s68, 1
    %p72 = scmp.eq.s32.totalorder %s13, 1
    %p73 = scmp.ne.s32.totalorder %s68, %s70
    %p74 = scmp.eq.s32.totalorder %s13, 0
    %p75 = por %p73, %p74
    %p76 = scmp.ne.s32.totalorder %s68, %s70
    %p77 = scmp.eq.s32.totalorder %s18, 1
    %p78 = por %p76, %p77
    %p79 = scmp.ne.s32.totalorder %s70, %s71
    %p80 = scmp.eq.s32.totalorder %s18, 0
    %p81 = por %p79, %p80
    %p82 = scmp.ne.s32.totalorder %s70, %s71
    %p83 = scmp.eq.s32.totalorder %s19, 1
    %p84 = por %p82, %p83
    %p86 = scmp.ne.s32.totalorder %s71, %s85
    %p87 = scmp.eq.s32.totalorder %s19, 0
    %p88 = por %p86, %p87
    %s90 = sadd.s32 %s89, 1
    %p93 = scmp.eq.s32.totalorder %s13, 1
    %p94 = scmp.ne.s32.totalorder %s89, %s91
    %p95 = scmp.eq.s32.totalorder %s13, 0
    %p96 = por %p94, %p95
    %p97 = scmp.ne.s32.totalorder %s89, %s91
    %p98 = scmp.eq.s32.totalorder %s18, 1
    %p99 = por %p97, %p98
    %p100 = scmp.ne.s32.totalorder %s91, %s92
    %p101 = scmp.eq.s32.totalorder %s18, 0
    %p102 = por %p100, %p101
    %p103 = scmp.ne.s32.totalorder %s91, %s92
    %p104 = scmp.eq.s32.totalorder %s19, 1
    %p105 = por %p103, %p104
    %p107 = scmp.ne.s32.totalorder %s92, %s106
    %p108 = scmp.eq.s32.totalorder %s19, 0
    %p109 = por %p107, %p108
    %s111 = sadd.s32 %s110, 1
    %p114 = scmp.eq.s32.totalorder %s13, 1
    %p115 = scmp.ne.s32.totalorder %s110, %s112
    %p116 = scmp.eq.s32.totalorder %s13, 0
    %p117 = por %p115, %p116
    %p118 = scmp.ne.s32.totalorder %s110, %s112
    %p119 = scmp.eq.s32.totalorder %s18, 1
    %p120 = por %p118, %p119
    %p121 = scmp.ne.s32.totalorder %s112, %s113
    %p122 = scmp.eq.s32.totalorder %s18, 0
    %p123 = por %p121, %p122
    %p124 = scmp.ne.s32.totalorder %s112, %s113
    %p125 = scmp.eq.s32.totalorder %s19, 1
    %p126 = por %p124, %p125
    %p128 = scmp.ne.s32.totalorder %s113, %s127
    %p129 = scmp.eq.s32.totalorder %s19, 0
    %p130 = por %p128, %p129
    %s131 = ssub.s32 %s13, %s20
    %p132 = scmp.eq.s32.totalorder %s131, 0
    %s134 = sadd.s32 %s133, 1
    %s135 = scalar_select %p132, %s133, %s134
    %p138 = pneg %p132
    %p139 = scmp.eq.s32.totalorder %s13, 1
    %p140 = por %p138, %p139
    %p141 = scmp.ne.s32.totalorder %s133, %s136
    %p142 = scmp.eq.s32.totalorder %s13, 0
    %p143 = por %p141, %p142
    %p144 = scmp.ne.s32.totalorder %s133, %s136
    %p145 = scmp.eq.s32.totalorder %s18, 1
    %p146 = por %p144, %p145
    %p147 = scmp.ne.s32.totalorder %s136, %s137
    %p148 = scmp.eq.s32.totalorder %s18, 0
    %p149 = por %p147, %p148
    %p150 = scmp.ne.s32.totalorder %s136, %s137
    %p151 = scmp.eq.s32.totalorder %s19, 1
    %p152 = por %p150, %p151
    %p154 = scmp.ne.s32.totalorder %s137, %s153
    %p155 = scmp.eq.s32.totalorder %s19, 0
    %p156 = por %p154, %p155
    %s157 = ssub.s32 %s13, %s20
    %p158 = scmp.eq.s32.totalorder %s157, 0
    %s160 = sadd.s32 %s159, 1
    %s161 = scalar_select %p158, %s159, %s160
    %p164 = pneg %p158
    %p165 = scmp.eq.s32.totalorder %s13, 1
    %p166 = por %p164, %p165
    %p167 = scmp.ne.s32.totalorder %s159, %s162
    %p168 = scmp.eq.s32.totalorder %s13, 0
    %p169 = por %p167, %p168
    %p170 = scmp.ne.s32.totalorder %s159, %s162
    %p171 = scmp.eq.s32.totalorder %s18, 1
    %p172 = por %p170, %p171
    %p173 = scmp.ne.s32.totalorder %s162, %s163
    %p174 = scmp.eq.s32.totalorder %s18, 0
    %p175 = por %p173, %p174
    %p176 = scmp.ne.s32.totalorder %s162, %s163
    %p177 = scmp.eq.s32.totalorder %s19, 1
    %p178 = por %p176, %p177
    %p180 = scmp.ne.s32.totalorder %s163, %s179
    %p181 = scmp.eq.s32.totalorder %s19, 0
    %p182 = por %p180, %p181
    %p183 = scmp.le.s32.totalorder 1, %s13
    %p184 = scmp.lt.s32.totalorder %s13, 3
    %p185 = pnand %p183, %p184
    %p186 = pneg %p185
    // Predicated region
    $region9: #{double_conv.2} parent=5 // pred_check
      _
    $region10: #{double_conv.2} parent=5 // pred_check_branch
      %188 = sbr.rel (%p185) target = $region12
    $region11: #{double_conv.2} parent=5 // pred_region
      %s189 = ssub.s32 %s13, 1
      // Predicated region
      $region13: #{double_conv.2} parent=11 // pred_check
        %p190 = pneg %p60
      $region14: #{double_conv.2} parent=11 // pred_check_branch
        %192 = sbr.rel (%p190) target = $region16
      $region15: #{double_conv.2} parent=11 // pred_region
        _
      $region16: #{double_conv.2} parent=11 // pred_fallthru
        _
      // Predicated region
      $region17: #{double_conv.2} parent=11 // pred_check
        %p193 = pneg %p81
      $region18: #{double_conv.2} parent=11 // pred_check_branch
        %195 = sbr.rel (%p193) target = $region20
      $region19: #{double_conv.2} parent=11 // pred_region
        _
      $region20: #{double_conv.2} parent=11 // pred_fallthru
        _
      // Predicated region
      $region21: #{double_conv.2} parent=11 // pred_check
        %p196 = pneg %p102
      $region22: #{double_conv.2} parent=11 // pred_check_branch
        %198 = sbr.rel (%p196) target = $region24
      $region23: #{double_conv.2} parent=11 // pred_region
        _
      $region24: #{double_conv.2} parent=11 // pred_fallthru
        _
      // Predicated region
      $region25: #{double_conv.2} parent=11 // pred_check
        %p199 = pneg %p123
      $region26: #{double_conv.2} parent=11 // pred_check_branch
        %201 = sbr.rel (%p199) target = $region28
      $region27: #{double_conv.2} parent=11 // pred_region
        _
      $region28: #{double_conv.2} parent=11 // pred_fallthru
        _
    $region12: #{double_conv.2} parent=5 // pred_fallthru
      _
    %p202 = scmp.lt.s32.totalorder %s13, 2
    // Predicated region
    $region29: #{double_conv.2} parent=5 // pred_check
      %p203 = pneg %p202
    $region30: #{double_conv.2} parent=5 // pred_check_branch
      %205 = sbr.rel (%p203) target = $region32
    $region31: #{double_conv.2} parent=5 // pred_region
      // Predicated region
      $region33: #{double_conv.2} parent=31 // pred_check
        %p206 = pneg %p33
      $region34: #{double_conv.2} parent=31 // pred_check_branch
        %208 = sbr.rel (%p206) target = $region36
      $region35: #{double_conv.2} parent=31 // pred_region
        %p209 = scmp.lt.s32.totalorder %s13, 1
        %s210 = scalar_select %p209, %s13, 1
        %s211 = smul.addr %s210, 2
        %s212 = smul.addr %s211, 4
        %s213 = scalar_lea.vmem %s0, %s212
      $region36: #{double_conv.2} parent=31 // pred_fallthru
        _
    $region32: #{double_conv.2} parent=5 // pred_fallthru
      _
    %p214 = scmp.le.s32.totalorder 1, %s13
    %p215 = scmp.lt.s32.totalorder %s13, 3
    %p216 = pnand %p214, %p215
    %p217 = pneg %p216
    // Predicated region
    $region37: #{double_conv.2} parent=5 // pred_check
      _
    $region38: #{double_conv.2} parent=5 // pred_check_branch
      %219 = sbr.rel (%p216) target = $region40
    $region39: #{double_conv.2} parent=5 // pred_region
      %s220 = ssub.s32 %s13, 1
      %p221 = scmp.lt.s32.totalorder %s18, 1
      %s222 = scalar_select %p221, %s18, 1
      %s223 = smul.addr %s222, 2
      %s224 = smul.addr %s223, 4
      %s225 = scalar_lea.vmem %s0, %s224
      %p226 = pneg %p39
      %p227 = pneg %p36
      %p228 = pneg %p60
      %p229 = pneg %p57
      %p230 = pneg %p81
      %p231 = pneg %p78
      %p232 = pneg %p102
      %p233 = pneg %p99
      %p234 = pneg %p123
      %p235 = pneg %p120
      %p236 = pneg %p149
      %p237 = pneg %p146
      %p238 = scmp.lt.s32.totalorder %s18, 1
      %s239 = scalar_select %p238, %s18, 1
      %s240 = smul.addr %s239, 2
      %s241 = smul.addr %s240, 4
      %s242 = scalar_lea.vmem %s5, %s241
      %p243 = pneg %p175
      %p244 = pneg %p172
      %p245 = scmp.lt.s32.totalorder %s18, 1
      %s246 = scalar_select %p245, %s18, 1
      %s247 = smul.addr %s246, 2
      %s248 = smul.addr %s247, 8
      %s249 = scalar_lea.vmem %s6, %s248
      %p250 = scmp.lt.s32.totalorder %s18, 1
      %s251 = scalar_select %p250, %s18, 1
      %s252 = smul.addr %s251, 2
      %s253 = smul.addr %s252, 4
      %s254 = scalar_lea.vmem %s0, %s253
      %p255 = scmp.lt.s32.totalorder %s18, 1
      %s256 = scalar_select %p255, %s18, 1
      %s257 = smul.addr %s256, 2
      %s258 = smul.addr %s257, 4
      %s259 = scalar_lea.vmem %s5, %s258
      %p260 = scmp.lt.s32.totalorder %s18, 1
      %s261 = scalar_select %p260, %s18, 1
      %s262 = smul.addr %s261, 2
      %s263 = smul.addr %s262, 8
      %s264 = scalar_lea.vmem %s6, %s263
      %v266 = vld [vmem:[%s254] sm:$0xff]
      %v267 = vunpack.c.l.bf16 %v266
      %v268 = vunpack.c.h.bf16 %v266
      %v269 = vld [vmem:[%s1] sm:$0xff]
      %v270 = vld [vmem:[%s1 + $0x8] sm:$0xff]
      %v271 = vld [vmem:[%s1 + $0x10] sm:$0x1]
      %v272 = vld [vmem:[%s1 + $0x18] sm:$0x1]
      %273 = vrot.lane.b32.xlu0 %v267, 17
      %v274 = vpop.permute.xlu0 %273
      %275 = vrot.lane.b32.xlu0 %v268, 17
      %v276 = vpop.permute.xlu0 %275
      %v277 = vlaneseq
      %v278 = vand.u32 %v277, 127
      %vm279 = vcmp.lt.s32.totalorder %v278, 17
      %v280 = vsel %vm279, %v274, %v276
      %v281 = vsel %vm279, %v276, %v274
      %v282 = vperm.slane %v269, 0
      %v283 = vperm.slane %v270, 0
      %v284 = vmul.f32 %v281, %v282
      %v285 = vmul.f32 %v280, %v283
      %286 = vrot.lane.b32.xlu0 %v267, 16
      %v287 = vpop.permute.xlu0 %286
      %288 = vrot.lane.b32.xlu0 %v268, 16
      %v289 = vpop.permute.xlu0 %288
      %vm290 = vcmp.lt.s32.totalorder %v278, 16
      %v291 = vsel %vm290, %v287, %v289
      %v292 = vsel %vm290, %v289, %v287
      %v293 = vperm.slane %v269, 1
      %v294 = vperm.slane %v270, 1
      %v295 = vmul.f32 %v292, %v293
      %v296 = vmul.f32 %v291, %v294
      %297 = vrot.lane.b32.xlu0 %v267, 15
      %v298 = vpop.permute.xlu0 %297
      %299 = vrot.lane.b32.xlu0 %v268, 15
      %v300 = vpop.permute.xlu0 %299
      %vm301 = vcmp.lt.s32.totalorder %v278, 15
      %v302 = vsel %vm301, %v298, %v300
      %v303 = vsel %vm301, %v300, %v298
      %v304 = vperm.slane %v269, 2
      %v305 = vperm.slane %v270, 2
      %v306 = vmul.f32 %v303, %v304
      %v307 = vmul.f32 %v302, %v305
      %308 = vrot.lane.b32.xlu0 %v267, 1
      %v309 = vpop.permute.xlu0 %308
      %310 = vrot.lane.b32.xlu0 %v268, 1
      %v311 = vpop.permute.xlu0 %310
      %vm312 = vcmp.lt.s32.totalorder %v278, 1
      %v313 = vsel %vm312, %v309, %v311
      %v314 = vsel %vm312, %v311, %v309
      %v315 = vperm.slane %v269, 3
      %v316 = vperm.slane %v270, 3
      %v317 = vmul.f32 %v314, %v315
      %v318 = vmul.f32 %v313, %v316
      %v319 = vperm.slane %v269, 4
      %v320 = vperm.slane %v270, 4
      %v321 = vmul.f32 %v267, %v319
      %v322 = vmul.f32 %v268, %v320
      %323 = vrot.lane.b32.xlu0 %v267, 127
      %v324 = vpop.permute.xlu0 %323
      %325 = vrot.lane.b32.xlu0 %v268, 127
      %v326 = vpop.permute.xlu0 %325
      %vm327 = vcmp.lt.s32.totalorder %v278, 127
      %v328 = vsel %vm327, %v324, %v326
      %v329 = vsel %vm327, %v326, %v324
      %v330 = vperm.slane %v269, 5
      %v331 = vperm.slane %v270, 5
      %v332 = vmul.f32 %v328, %v330
      %v333 = vmul.f32 %v329, %v331
      %334 = vrot.lane.b32.xlu0 %v267, 113
      %v335 = vpop.permute.xlu0 %334
      %336 = vrot.lane.b32.xlu0 %v268, 113
      %v337 = vpop.permute.xlu0 %336
      %vm338 = vcmp.lt.s32.totalorder %v278, 113
      %v339 = vsel %vm338, %v335, %v337
      %v340 = vsel %vm338, %v337, %v335
      %v341 = vperm.slane %v269, 6
      %v342 = vperm.slane %v270, 6
      %v343 = vmul.f32 %v339, %v341
      %v344 = vmul.f32 %v340, %v342
      %345 = vrot.lane.b32.xlu0 %v267, 112
      %v346 = vpop.permute.xlu0 %345
      %347 = vrot.lane.b32.xlu0 %v268, 112
      %v348 = vpop.permute.xlu0 %347
      %vm349 = vcmp.lt.s32.totalorder %v278, 112
      %v350 = vsel %vm349, %v346, %v348
      %v351 = vsel %vm349, %v348, %v346
      %v352 = vperm.slane %v269, 7
      %v353 = vperm.slane %v270, 7
      %v354 = vmul.f32 %v350, %v352
      %v355 = vmul.f32 %v351, %v353
      %356 = vrot.lane.b32.xlu0 %v267, 111
      %v357 = vpop.permute.xlu0 %356
      %358 = vrot.lane.b32.xlu0 %v268, 111
      %v359 = vpop.permute.xlu0 %358
      %vm360 = vcmp.lt.s32.totalorder %v278, 111
      %v361 = vsel %vm360, %v357, %v359
      %v362 = vsel %vm360, %v359, %v357
      %v363 = vperm.slane %v271, 0
      %v364 = vperm.slane %v272, 0
      %v365 = vmul.f32 %v361, %v363
      %v366 = vmul.f32 %v362, %v364
      %v367 = vpack.c.bf16 %v295, %v284
      %v368 = vpack.c.bf16 %v296, %v285
      %v369 = vpack.c.bf16 %v317, %v306
      %v370 = vpack.c.bf16 %v318, %v307
      %v371 = vpack.c.bf16 %v332, %v321
      %v372 = vpack.c.bf16 %v333, %v322
      %v373 = vpack.c.bf16 %v354, %v343
      %v374 = vpack.c.bf16 %v355, %v344
      %v375 = vpack.c.bf16 %v365, %v365
      %v376 = vpack.c.bf16 %v366, %v366
      %v377 = vld [vmem:[%s2] sm:$0xf]
      %vm378 = vcmask 588800
      %v380 = vsel %vm378, %v377, 0
      %vm382 = vcmask 1043456
      %v384 = vsel %vm382, %v375, 0
      %v387 = vsel %vm382, %v376, 0
      %389 = vmatpush.bf16.msra.mxu0 0
      %390 = vmatpush.bf16.msra.mxu0 0
      %391 = vmatpush.bf16.msra.mxu0 0
      %392 = vmatpush.bf16.msra.mxu0 %v384
      %393 = vmatpush.bf16.msra.mxu0 %v373
      %394 = vmatpush.bf16.msra.mxu0 %v371
      %395 = vmatpush.bf16.msra.mxu0 %v369
      %396 = vmatpush.bf16.msra.mxu0 %v367
      %397 = vmatmul.bf16.gmra.mxu0 %v380
      %v398 = vpop.f32.mrf.mxu0
      %v399 = vadd.f32 0.0, %v398
      %v400 = vpop.f32.mrf.mxu0
      %401 = vdwg.mxu0
      %402 = vmatpush.bf16.msra.mxu0 0
      %403 = vmatpush.bf16.msra.mxu0 0
      %404 = vmatpush.bf16.msra.mxu0 0
      %405 = vmatpush.bf16.msra.mxu0 %v387
      %406 = vmatpush.bf16.msra.mxu0 %v374
      %407 = vmatpush.bf16.msra.mxu0 %v372
      %408 = vmatpush.bf16.msra.mxu0 %v370
      %409 = vmatpush.bf16.msra.mxu0 %v368
      %410 = vmatmul.bf16.gmra.mxu0 %v380
      %v411 = vpop.f32.mrf.mxu0
      %v412 = vadd.f32 0.0, %v411
      %v413 = vpop.f32.mrf.mxu0
      %414 = vdwg.mxu0
      %v415 = vpack.c.bf16 %v412, %v399
      %416 = vst [vmem:[%s259] sm:$0xff] %v415
      %v417 = vadd.f32 %v399, %v412
      %418 = vadd.xlane.f32.xlu0 %v417
      %v419 = vpop.xlane.xlu0 %418
      %v420 = vmul.f32 %v399, %v399
      %v421 = vmul.f32 %v412, %v412
      %v422 = vadd.f32 %v420, %v421
      %423 = vadd.xlane.f32.xlu0 %v422
      %v424 = vpop.xlane.xlu0 %423
      %vm425 = vcmask 7168
      %426 = vst.msk [vmem:[%s264] sm:$0xff] %vm425, %v419
      %427 = vst.msk [vmem:[%s264 + $0x8] sm:$0xff] %vm425, %v424
      %p428 = scmp.lt.s32.totalorder %s18, 1
      %s429 = scalar_select %p428, %s18, 1
      %s430 = smul.addr %s429, 2
      %s431 = smul.addr %s430, 4
      %s432 = scalar_lea.vmem %s5, %s431
      %p433 = scmp.lt.s32.totalorder %s18, 1
      %s434 = scalar_select %p433, %s18, 1
      %s435 = smul.addr %s434, 2
      %s436 = smul.addr %s435, 8
      %s437 = scalar_lea.vmem %s6, %s436
      // Predicated region
      $region41: #{double_conv.2} parent=39 // pred_check
        %p438 = pneg %p146
      $region42: #{double_conv.2} parent=39 // pred_check_branch
        %440 = sbr.rel (%p438) target = $region44
      $region43: #{double_conv.2} parent=39 // pred_region
        _
      $region44: #{double_conv.2} parent=39 // pred_fallthru
        _
      // Predicated region
      $region45: #{double_conv.2} parent=39 // pred_check
        %p441 = pneg %p172
      $region46: #{double_conv.2} parent=39 // pred_check_branch
        %443 = sbr.rel (%p441) target = $region48
      $region47: #{double_conv.2} parent=39 // pred_region
        _
      $region48: #{double_conv.2} parent=39 // pred_fallthru
        _
    $region40: #{double_conv.2} parent=5 // pred_fallthru
      _
    %p444 = scmp.le.s32.totalorder 2, %s13
    // Predicated region
    $region49: #{double_conv.2} parent=5 // pred_check
      %p445 = pneg %p444
    $region50: #{double_conv.2} parent=5 // pred_check_branch
      %447 = sbr.rel (%p445) target = $region52
    $region51: #{double_conv.2} parent=5 // pred_region
      %s448 = ssub.s32 %s13, 2
      // Predicated region
      $region53: #{double_conv.2} parent=51 // pred_check
        %p449 = pneg %p152
      $region54: #{double_conv.2} parent=51 // pred_check_branch
        %451 = sbr.rel (%p449) target = $region56
      $region55: #{double_conv.2} parent=51 // pred_region
        %p452 = scmp.lt.s32.totalorder %s19, 1
        %s453 = scalar_select %p452, %s19, 1
        %s454 = smul.addr %s453, 2
        %s455 = smul.addr %s454, 4
        %s456 = scalar_lea.vmem %s5, %s455
      $region56: #{double_conv.2} parent=51 // pred_fallthru
        _
      // Predicated region
      $region57: #{double_conv.2} parent=51 // pred_check
        %p457 = pneg %p178
      $region58: #{double_conv.2} parent=51 // pred_check_branch
        %459 = sbr.rel (%p457) target = $region60
      $region59: #{double_conv.2} parent=51 // pred_region
        %p460 = scmp.lt.s32.totalorder %s19, 1
        %s461 = scalar_select %p460, %s19, 1
        %s462 = smul.addr %s461, 2
        %s463 = smul.addr %s462, 8
        %s464 = scalar_lea.vmem %s6, %s463
      $region60: #{double_conv.2} parent=51 // pred_fallthru
        _
    $region52: #{double_conv.2} parent=5 // pred_fallthru
      _
  $region6: #{double_conv.2} parent=0 // loop_footer
    %s17 = sadd.s32 1, %s13
  $region7: #{double_conv.2} parent=0 // loop_footer_branch
    %12 = sbr.rel target = $region3
  $region8: #{double_conv.2} parent=0 // loop_exit
    _

// kernel: double_conv.3
$region0: #{double_conv.3}
  #allocation0 [shape = 'u32[]', space=smem, size = 0x4, offset = 0x4, fixed_abs, tag = 'smem constant byte address 0x4 - core index']
  #allocation1 [shape = 'u32[72,128]{1,0:T(1,128)}', space=vmem, size = 0x9000, scoped, tag = 'internal scratch']
  %s0 = inlined_call_operand.vmem [shape: bf16[2,8,256], index: 0, kind: input, shape index: {}]
  %s1 = inlined_call_operand.vmem [shape: f32[9,256], index: 1, kind: input, shape index: {}]
  %s2 = inlined_call_operand.vmem [shape: bf16[8,72], index: 2, kind: input, shape index: {}]
  %s3 = inlined_call_operand.vmem [shape: f32[8,1], index: 3, kind: input, shape index: {}]
  %s4 = inlined_call_operand.vmem [shape: f32[8,1], index: 4, kind: input, shape index: {}]
  %s5 = inlined_call_operand.vmem [shape: bf16[2,8,256], index: 5, kind: output, shape index: {0}]
  %s6 = inlined_call_operand.vmem [shape: f32[2,16,1], index: 6, kind: output, shape index: {1}]
  %7 = xla_tuple %s5, %s6
  %s8 = sld [smem:[#allocation0]]
  $region61: #{double_conv.3} parent=0
    _
  %s10 = ssub.s32 1, %s8
  %s11 = scalar_select 0, %s10, %s8
  loop: start=0, step=1, limit=4
  $region2: #{double_conv.3} parent=0 // loop_pre_header
    _
  $region3: #{double_conv.3} parent=0 // loop_header
    %s13 = sphi 0, %s17
    %p14 = scmp.ge.s32.totalorder %s13, 4
    %s23 = sphi 0, %s25
    %s26 = sphi 0, %s23
    %s27 = sphi 0, %s26
    %s43 = sphi 0, %s27
    %s47 = sphi 0, %s47
    %s49 = sphi 0, %s47
    %s50 = sphi 0, %s49
    %s64 = sphi 0, %s50
    %s68 = sphi 0, %s68
    %s70 = sphi 0, %s68
    %s71 = sphi 0, %s70
    %s85 = sphi 0, %s71
    %s89 = sphi 0, %s89
    %s91 = sphi 0, %s89
    %s92 = sphi 0, %s91
    %s106 = sphi 0, %s92
    %s110 = sphi 0, %s110
    %s112 = sphi 0, %s110
    %s113 = sphi 0, %s112
    %s127 = sphi 0, %s113
    %s133 = sphi 0, %s135
    %s136 = sphi 0, %s133
    %s137 = sphi 0, %s136
    %s153 = sphi 0, %s137
    %s159 = sphi 0, %s161
    %s162 = sphi 0, %s159
    %s163 = sphi 0, %s162
    %s179 = sphi 0, %s163
  $region4: #{double_conv.3} parent=0 // loop_header_branch
    %16 = sbr.rel (%p14) target = $region8
  $region5: #{double_conv.3} parent=0 // loop_body
    %s18 = ssub.s32 %s13, 1
    %s19 = ssub.s32 %s13, 2
    %s20 = sadd.s32 %s13, 1
    %s21 = ssub.s32 %s13, %s20
    %p22 = scmp.eq.s32.totalorder %s21, 0
    %s24 = sadd.s32 %s23, 1
    %s25 = scalar_select %p22, %s23, %s24
    %p28 = pneg %p22
    %p29 = scmp.eq.s32.totalorder %s13, 1
    %p30 = por %p28, %p29
    %p31 = scmp.ne.s32.totalorder %s23, %s26
    %p32 = scmp.eq.s32.totalorder %s13, 0
    %p33 = por %p31, %p32
    %p34 = scmp.ne.s32.totalorder %s23, %s26
    %p35 = scmp.eq.s32.totalorder %s18, 1
    %p36 = por %p34, %p35
    %p37 = scmp.ne.s32.totalorder %s26, %s27
    %p38 = scmp.eq.s32.totalorder %s18, 0
    %p39 = por %p37, %p38
    %p40 = scmp.ne.s32.totalorder %s26, %s27
    %p41 = scmp.eq.s32.totalorder %s19, 1
    %p42 = por %p40, %p41
    %p44 = scmp.ne.s32.totalorder %s27, %s43
    %p45 = scmp.eq.s32.totalorder %s19, 0
    %p46 = por %p44, %p45
    %s48 = sadd.s32 %s47, 1
    %p51 = scmp.eq.s32.totalorder %s13, 1
    %p52 = scmp.ne.s32.totalorder %s47, %s49
    %p53 = scmp.eq.s32.totalorder %s13, 0
    %p54 = por %p52, %p53
    %p55 = scmp.ne.s32.totalorder %s47, %s49
    %p56 = scmp.eq.s32.totalorder %s18, 1
    %p57 = por %p55, %p56
    %p58 = scmp.ne.s32.totalorder %s49, %s50
    %p59 = scmp.eq.s32.totalorder %s18, 0
    %p60 = por %p58, %p59
    %p61 = scmp.ne.s32.totalorder %s49, %s50
    %p62 = scmp.eq.s32.totalorder %s19, 1
    %p63 = por %p61, %p62
    %p65 = scmp.ne.s32.totalorder %s50, %s64
    %p66 = scmp.eq.s32.totalorder %s19, 0
    %p67 = por %p65, %p66
    %s69 = sadd.s32 %s68, 1
    %p72 = scmp.eq.s32.totalorder %s13, 1
    %p73 = scmp.ne.s32.totalorder %s68, %s70
    %p74 = scmp.eq.s32.totalorder %s13, 0
    %p75 = por %p73, %p74
    %p76 = scmp.ne.s32.totalorder %s68, %s70
    %p77 = scmp.eq.s32.totalorder %s18, 1
    %p78 = por %p76, %p77
    %p79 = scmp.ne.s32.totalorder %s70, %s71
    %p80 = scmp.eq.s32.totalorder %s18, 0
    %p81 = por %p79, %p80
    %p82 = scmp.ne.s32.totalorder %s70, %s71
    %p83 = scmp.eq.s32.totalorder %s19, 1
    %p84 = por %p82, %p83
    %p86 = scmp.ne.s32.totalorder %s71, %s85
    %p87 = scmp.eq.s32.totalorder %s19, 0
    %p88 = por %p86, %p87
    %s90 = sadd.s32 %s89, 1
    %p93 = scmp.eq.s32.totalorder %s13, 1
    %p94 = scmp.ne.s32.totalorder %s89, %s91
    %p95 = scmp.eq.s32.totalorder %s13, 0
    %p96 = por %p94, %p95
    %p97 = scmp.ne.s32.totalorder %s89, %s91
    %p98 = scmp.eq.s32.totalorder %s18, 1
    %p99 = por %p97, %p98
    %p100 = scmp.ne.s32.totalorder %s91, %s92
    %p101 = scmp.eq.s32.totalorder %s18, 0
    %p102 = por %p100, %p101
    %p103 = scmp.ne.s32.totalorder %s91, %s92
    %p104 = scmp.eq.s32.totalorder %s19, 1
    %p105 = por %p103, %p104
    %p107 = scmp.ne.s32.totalorder %s92, %s106
    %p108 = scmp.eq.s32.totalorder %s19, 0
    %p109 = por %p107, %p108
    %s111 = sadd.s32 %s110, 1
    %p114 = scmp.eq.s32.totalorder %s13, 1
    %p115 = scmp.ne.s32.totalorder %s110, %s112
    %p116 = scmp.eq.s32.totalorder %s13, 0
    %p117 = por %p115, %p116
    %p118 = scmp.ne.s32.totalorder %s110, %s112
    %p119 = scmp.eq.s32.totalorder %s18, 1
    %p120 = por %p118, %p119
    %p121 = scmp.ne.s32.totalorder %s112, %s113
    %p122 = scmp.eq.s32.totalorder %s18, 0
    %p123 = por %p121, %p122
    %p124 = scmp.ne.s32.totalorder %s112, %s113
    %p125 = scmp.eq.s32.totalorder %s19, 1
    %p126 = por %p124, %p125
    %p128 = scmp.ne.s32.totalorder %s113, %s127
    %p129 = scmp.eq.s32.totalorder %s19, 0
    %p130 = por %p128, %p129
    %s131 = ssub.s32 %s13, %s20
    %p132 = scmp.eq.s32.totalorder %s131, 0
    %s134 = sadd.s32 %s133, 1
    %s135 = scalar_select %p132, %s133, %s134
    %p138 = pneg %p132
    %p139 = scmp.eq.s32.totalorder %s13, 1
    %p140 = por %p138, %p139
    %p141 = scmp.ne.s32.totalorder %s133, %s136
    %p142 = scmp.eq.s32.totalorder %s13, 0
    %p143 = por %p141, %p142
    %p144 = scmp.ne.s32.totalorder %s133, %s136
    %p145 = scmp.eq.s32.totalorder %s18, 1
    %p146 = por %p144, %p145
    %p147 = scmp.ne.s32.totalorder %s136, %s137
    %p148 = scmp.eq.s32.totalorder %s18, 0
    %p149 = por %p147, %p148
    %p150 = scmp.ne.s32.totalorder %s136, %s137
    %p151 = scmp.eq.s32.totalorder %s19, 1
    %p152 = por %p150, %p151
    %p154 = scmp.ne.s32.totalorder %s137, %s153
    %p155 = scmp.eq.s32.totalorder %s19, 0
    %p156 = por %p154, %p155
    %s157 = ssub.s32 %s13, %s20
    %p158 = scmp.eq.s32.totalorder %s157, 0
    %s160 = sadd.s32 %s159, 1
    %s161 = scalar_select %p158, %s159, %s160
    %p164 = pneg %p158
    %p165 = scmp.eq.s32.totalorder %s13, 1
    %p166 = por %p164, %p165
    %p167 = scmp.ne.s32.totalorder %s159, %s162
    %p168 = scmp.eq.s32.totalorder %s13, 0
    %p169 = por %p167, %p168
    %p170 = scmp.ne.s32.totalorder %s159, %s162
    %p171 = scmp.eq.s32.totalorder %s18, 1
    %p172 = por %p170, %p171
    %p173 = scmp.ne.s32.totalorder %s162, %s163
    %p174 = scmp.eq.s32.totalorder %s18, 0
    %p175 = por %p173, %p174
    %p176 = scmp.ne.s32.totalorder %s162, %s163
    %p177 = scmp.eq.s32.totalorder %s19, 1
    %p178 = por %p176, %p177
    %p180 = scmp.ne.s32.totalorder %s163, %s179
    %p181 = scmp.eq.s32.totalorder %s19, 0
    %p182 = por %p180, %p181
    %p183 = scmp.le.s32.totalorder 1, %s13
    %p184 = scmp.lt.s32.totalorder %s13, 3
    %p185 = pnand %p183, %p184
    %p186 = pneg %p185
    // Predicated region
    $region9: #{double_conv.3} parent=5 // pred_check
      _
    $region10: #{double_conv.3} parent=5 // pred_check_branch
      %188 = sbr.rel (%p185) target = $region12
    $region11: #{double_conv.3} parent=5 // pred_region
      %s189 = ssub.s32 %s13, 1
      // Predicated region
      $region13: #{double_conv.3} parent=11 // pred_check
        %p190 = pneg %p60
      $region14: #{double_conv.3} parent=11 // pred_check_branch
        %192 = sbr.rel (%p190) target = $region16
      $region15: #{double_conv.3} parent=11 // pred_region
        _
      $region16: #{double_conv.3} parent=11 // pred_fallthru
        _
      // Predicated region
      $region17: #{double_conv.3} parent=11 // pred_check
        %p193 = pneg %p81
      $region18: #{double_conv.3} parent=11 // pred_check_branch
        %195 = sbr.rel (%p193) target = $region20
      $region19: #{double_conv.3} parent=11 // pred_region
        _
      $region20: #{double_conv.3} parent=11 // pred_fallthru
        _
      // Predicated region
      $region21: #{double_conv.3} parent=11 // pred_check
        %p196 = pneg %p102
      $region22: #{double_conv.3} parent=11 // pred_check_branch
        %198 = sbr.rel (%p196) target = $region24
      $region23: #{double_conv.3} parent=11 // pred_region
        _
      $region24: #{double_conv.3} parent=11 // pred_fallthru
        _
      // Predicated region
      $region25: #{double_conv.3} parent=11 // pred_check
        %p199 = pneg %p123
      $region26: #{double_conv.3} parent=11 // pred_check_branch
        %201 = sbr.rel (%p199) target = $region28
      $region27: #{double_conv.3} parent=11 // pred_region
        _
      $region28: #{double_conv.3} parent=11 // pred_fallthru
        _
    $region12: #{double_conv.3} parent=5 // pred_fallthru
      _
    %p202 = scmp.lt.s32.totalorder %s13, 2
    // Predicated region
    $region29: #{double_conv.3} parent=5 // pred_check
      %p203 = pneg %p202
    $region30: #{double_conv.3} parent=5 // pred_check_branch
      %205 = sbr.rel (%p203) target = $region32
    $region31: #{double_conv.3} parent=5 // pred_region
      // Predicated region
      $region33: #{double_conv.3} parent=31 // pred_check
        %p206 = pneg %p33
      $region34: #{double_conv.3} parent=31 // pred_check_branch
        %208 = sbr.rel (%p206) target = $region36
      $region35: #{double_conv.3} parent=31 // pred_region
        %p209 = scmp.lt.s32.totalorder %s13, 1
        %s210 = scalar_select %p209, %s13, 1
        %s211 = smul.addr %s210, 2
        %s212 = smul.addr %s211, 4
        %s213 = scalar_lea.vmem %s0, %s212
      $region36: #{double_conv.3} parent=31 // pred_fallthru
        _
    $region32: #{double_conv.3} parent=5 // pred_fallthru
      _
    %p214 = scmp.le.s32.totalorder 1, %s13
    %p215 = scmp.lt.s32.totalorder %s13, 3
    %p216 = pnand %p214, %p215
    %p217 = pneg %p216
    // Predicated region
    $region37: #{double_conv.3} parent=5 // pred_check
      _
    $region38: #{double_conv.3} parent=5 // pred_check_branch
      %219 = sbr.rel (%p216) target = $region40
    $region39: #{double_conv.3} parent=5 // pred_region
      %s220 = ssub.s32 %s13, 1
      %p221 = scmp.lt.s32.totalorder %s18, 1
      %s222 = scalar_select %p221, %s18, 1
      %s223 = smul.addr %s222, 2
      %s224 = smul.addr %s223, 4
      %s225 = scalar_lea.vmem %s0, %s224
      %p226 = pneg %p39
      %p227 = pneg %p36
      %p228 = pneg %p60
      %p229 = pneg %p57
      %p230 = pneg %p81
      %p231 = pneg %p78
      %p232 = pneg %p102
      %p233 = pneg %p99
      %p234 = pneg %p123
      %p235 = pneg %p120
      %p236 = pneg %p149
      %p237 = pneg %p146
      %p238 = scmp.lt.s32.totalorder %s18, 1
      %s239 = scalar_select %p238, %s18, 1
      %s240 = smul.addr %s239, 2
      %s241 = smul.addr %s240, 4
      %s242 = scalar_lea.vmem %s5, %s241
      %p243 = pneg %p175
      %p244 = pneg %p172
      %p245 = scmp.lt.s32.totalorder %s18, 1
      %s246 = scalar_select %p245, %s18, 1
      %s247 = smul.addr %s246, 2
      %s248 = smul.addr %s247, 8
      %s249 = scalar_lea.vmem %s6, %s248
      %p250 = scmp.lt.s32.totalorder %s18, 1
      %s251 = scalar_select %p250, %s18, 1
      %s252 = smul.addr %s251, 2
      %s253 = smul.addr %s252, 4
      %s254 = scalar_lea.vmem %s0, %s253
      %p255 = scmp.lt.s32.totalorder %s18, 1
      %s256 = scalar_select %p255, %s18, 1
      %s257 = smul.addr %s256, 2
      %s258 = smul.addr %s257, 4
      %s259 = scalar_lea.vmem %s5, %s258
      %p260 = scmp.lt.s32.totalorder %s18, 1
      %s261 = scalar_select %p260, %s18, 1
      %s262 = smul.addr %s261, 2
      %s263 = smul.addr %s262, 8
      %s264 = scalar_lea.vmem %s6, %s263
      %v266 = vld [vmem:[%s254] sm:$0xff]
      %v267 = vunpack.c.l.bf16 %v266
      %v268 = vunpack.c.h.bf16 %v266
      %v269 = vld [vmem:[%s3] sm:$0xff]
      %271 = vset.pattern.permute.xlu0 0
      %272 = vperm.xlu0 %271, %v269
      %v273 = vpop.permute.xlu0 %272
      %v275 = vmul.f32 %v267, %v273
      %v276 = vmul.f32 %v268, %v273
      %v277 = vld [vmem:[%s4] sm:$0xff]
      %279 = vset.pattern.permute.xlu0 0
      %280 = vperm.xlu0 %279, %v277
      %v281 = vpop.permute.xlu0 %280
      %v283 = vadd.f32 %v275, %v281
      %v284 = vadd.f32 %v276, %v281
      %v285 = vmax.f32 %v283, 0.0
      %v286 = vmax.f32 %v284, 0.0
      %v287 = vld [vmem:[%s1] sm:$0xff]
      %v288 = vld [vmem:[%s1 + $0x8] sm:$0xff]
      %v289 = vld [vmem:[%s1 + $0x10] sm:$0x1]
      %v290 = vld [vmem:[%s1 + $0x18] sm:$0x1]
      %291 = vrot.lane.b32.xlu0 %v285, 17
      %v292 = vpop.permute.xlu0 %291
      %293 = vrot.lane.b32.xlu0 %v286, 17
      %v294 = vpop.permute.xlu0 %293
      %v295 = vlaneseq
      %v296 = vand.u32 %v295, 127
      %vm297 = vcmp.lt.s32.totalorder %v296, 17
      %v298 = vsel %vm297, %v292, %v294
      %v299 = vsel %vm297, %v294, %v292
      %v300 = vperm.slane %v287, 0
      %v301 = vperm.slane %v288, 0
      %v302 = vmul.f32 %v299, %v300
      %v303 = vmul.f32 %v298, %v301
      %304 = vrot.lane.b32.xlu0 %v285, 16
      %v305 = vpop.permute.xlu0 %304
      %306 = vrot.lane.b32.xlu0 %v286, 16
      %v307 = vpop.permute.xlu0 %306
      %vm308 = vcmp.lt.s32.totalorder %v296, 16
      %v309 = vsel %vm308, %v305, %v307
      %v310 = vsel %vm308, %v307, %v305
      %v311 = vperm.slane %v287, 1
      %v312 = vperm.slane %v288, 1
      %v313 = vmul.f32 %v310, %v311
      %v314 = vmul.f32 %v309, %v312
      %315 = vrot.lane.b32.xlu0 %v285, 15
      %v316 = vpop.permute.xlu0 %315
      %317 = vrot.lane.b32.xlu0 %v286, 15
      %v318 = vpop.permute.xlu0 %317
      %vm319 = vcmp.lt.s32.totalorder %v296, 15
      %v320 = vsel %vm319, %v316, %v318
      %v321 = vsel %vm319, %v318, %v316
      %v322 = vperm.slane %v287, 2
      %v323 = vperm.slane %v288, 2
      %v324 = vmul.f32 %v321, %v322
      %v325 = vmul.f32 %v320, %v323
      %326 = vrot.lane.b32.xlu0 %v285, 1
      %v327 = vpop.permute.xlu0 %326
      %328 = vrot.lane.b32.xlu0 %v286, 1
      %v329 = vpop.permute.xlu0 %328
      %vm330 = vcmp.lt.s32.totalorder %v296, 1
      %v331 = vsel %vm330, %v327, %v329
      %v332 = vsel %vm330, %v329, %v327
      %v333 = vperm.slane %v287, 3
      %v334 = vperm.slane %v288, 3
      %v335 = vmul.f32 %v332, %v333
      %v336 = vmul.f32 %v331, %v334
      %v337 = vperm.slane %v287, 4
      %v338 = vperm.slane %v288, 4
      %v339 = vmul.f32 %v285, %v337
      %v340 = vmul.f32 %v286, %v338
      %341 = vrot.lane.b32.xlu0 %v285, 127
      %v342 = vpop.permute.xlu0 %341
      %343 = vrot.lane.b32.xlu0 %v286, 127
      %v344 = vpop.permute.xlu0 %343
      %vm345 = vcmp.lt.s32.totalorder %v296, 127
      %v346 = vsel %vm345, %v342, %v344
      %v347 = vsel %vm345, %v344, %v342
      %v348 = vperm.slane %v287, 5
      %v349 = vperm.slane %v288, 5
      %v350 = vmul.f32 %v346, %v348
      %v351 = vmul.f32 %v347, %v349
      %352 = vrot.lane.b32.xlu0 %v285, 113
      %v353 = vpop.permute.xlu0 %352
      %354 = vrot.lane.b32.xlu0 %v286, 113
      %v355 = vpop.permute.xlu0 %354
      %vm356 = vcmp.lt.s32.totalorder %v296, 113
      %v357 = vsel %vm356, %v353, %v355
      %v358 = vsel %vm356, %v355, %v353
      %v359 = vperm.slane %v287, 6
      %v360 = vperm.slane %v288, 6
      %v361 = vmul.f32 %v357, %v359
      %v362 = vmul.f32 %v358, %v360
      %363 = vrot.lane.b32.xlu0 %v285, 112
      %v364 = vpop.permute.xlu0 %363
      %365 = vrot.lane.b32.xlu0 %v286, 112
      %v366 = vpop.permute.xlu0 %365
      %vm367 = vcmp.lt.s32.totalorder %v296, 112
      %v368 = vsel %vm367, %v364, %v366
      %v369 = vsel %vm367, %v366, %v364
      %v370 = vperm.slane %v287, 7
      %v371 = vperm.slane %v288, 7
      %v372 = vmul.f32 %v368, %v370
      %v373 = vmul.f32 %v369, %v371
      %374 = vrot.lane.b32.xlu0 %v285, 111
      %v375 = vpop.permute.xlu0 %374
      %376 = vrot.lane.b32.xlu0 %v286, 111
      %v377 = vpop.permute.xlu0 %376
      %vm378 = vcmp.lt.s32.totalorder %v296, 111
      %v379 = vsel %vm378, %v375, %v377
      %v380 = vsel %vm378, %v377, %v375
      %v381 = vperm.slane %v289, 0
      %v382 = vperm.slane %v290, 0
      %v383 = vmul.f32 %v379, %v381
      %v384 = vmul.f32 %v380, %v382
      %v385 = vpack.c.bf16 %v313, %v302
      %v386 = vpack.c.bf16 %v314, %v303
      %v387 = vpack.c.bf16 %v335, %v324
      %v388 = vpack.c.bf16 %v336, %v325
      %v389 = vpack.c.bf16 %v350, %v339
      %v390 = vpack.c.bf16 %v351, %v340
      %v391 = vpack.c.bf16 %v372, %v361
      %v392 = vpack.c.bf16 %v373, %v362
      %v393 = vpack.c.bf16 %v383, %v383
      %v394 = vpack.c.bf16 %v384, %v384
      %v395 = vld [vmem:[%s2] sm:$0xf]
      %vm396 = vcmask 588800
      %v398 = vsel %vm396, %v395, 0
      %vm400 = vcmask 1043456
      %v402 = vsel %vm400, %v393, 0
      %v405 = vsel %vm400, %v394, 0
      %407 = vmatpush.bf16.msra.mxu0 0
      %408 = vmatpush.bf16.msra.mxu0 0
      %409 = vmatpush.bf16.msra.mxu0 0
      %410 = vmatpush.bf16.msra.mxu0 %v402
      %411 = vmatpush.bf16.msra.mxu0 %v391
      %412 = vmatpush.bf16.msra.mxu0 %v389
      %413 = vmatpush.bf16.msra.mxu0 %v387
      %414 = vmatpush.bf16.msra.mxu0 %v385
      %415 = vmatmul.bf16.gmra.mxu0 %v398
      %v416 = vpop.f32.mrf.mxu0
      %v417 = vadd.f32 0.0, %v416
      %v418 = vpop.f32.mrf.mxu0
      %419 = vdwg.mxu0
      %420 = vmatpush.bf16.msra.mxu0 0
      %421 = vmatpush.bf16.msra.mxu0 0
      %422 = vmatpush.bf16.msra.mxu0 0
      %423 = vmatpush.bf16.msra.mxu0 %v405
      %424 = vmatpush.bf16.msra.mxu0 %v392
      %425 = vmatpush.bf16.msra.mxu0 %v390
      %426 = vmatpush.bf16.msra.mxu0 %v388
      %427 = vmatpush.bf16.msra.mxu0 %v386
      %428 = vmatmul.bf16.gmra.mxu0 %v398
      %v429 = vpop.f32.mrf.mxu0
      %v430 = vadd.f32 0.0, %v429
      %v431 = vpop.f32.mrf.mxu0
      %432 = vdwg.mxu0
      %v433 = vpack.c.bf16 %v430, %v417
      %434 = vst [vmem:[%s259] sm:$0xff] %v433
      %v435 = vadd.f32 %v417, %v430
      %436 = vadd.xlane.f32.xlu0 %v435
      %v437 = vpop.xlane.xlu0 %436
      %v438 = vmul.f32 %v417, %v417
      %v439 = vmul.f32 %v430, %v430
      %v440 = vadd.f32 %v438, %v439
      %441 = vadd.xlane.f32.xlu0 %v440
      %v442 = vpop.xlane.xlu0 %441
      %vm443 = vcmask 7168
      %444 = vst.msk [vmem:[%s264] sm:$0xff] %vm443, %v437
      %445 = vst.msk [vmem:[%s264 + $0x8] sm:$0xff] %vm443, %v442
      %p446 = scmp.lt.s32.totalorder %s18, 1
      %s447 = scalar_select %p446, %s18, 1
      %s448 = smul.addr %s447, 2
      %s449 = smul.addr %s448, 4
      %s450 = scalar_lea.vmem %s5, %s449
      %p451 = scmp.lt.s32.totalorder %s18, 1
      %s452 = scalar_select %p451, %s18, 1
      %s453 = smul.addr %s452, 2
      %s454 = smul.addr %s453, 8
      %s455 = scalar_lea.vmem %s6, %s454
      // Predicated region
      $region41: #{double_conv.3} parent=39 // pred_check
        %p456 = pneg %p146
      $region42: #{double_conv.3} parent=39 // pred_check_branch
        %458 = sbr.rel (%p456) target = $region44
      $region43: #{double_conv.3} parent=39 // pred_region
        _
      $region44: #{double_conv.3} parent=39 // pred_fallthru
        _
      // Predicated region
      $region45: #{double_conv.3} parent=39 // pred_check
        %p459 = pneg %p172
      $region46: #{double_conv.3} parent=39 // pred_check_branch
        %461 = sbr.rel (%p459) target = $region48
      $region47: #{double_conv.3} parent=39 // pred_region
        _
      $region48: #{double_conv.3} parent=39 // pred_fallthru
        _
    $region40: #{double_conv.3} parent=5 // pred_fallthru
      _
    %p462 = scmp.le.s32.totalorder 2, %s13
    // Predicated region
    $region49: #{double_conv.3} parent=5 // pred_check
      %p463 = pneg %p462
    $region50: #{double_conv.3} parent=5 // pred_check_branch
      %465 = sbr.rel (%p463) target = $region52
    $region51: #{double_conv.3} parent=5 // pred_region
      %s466 = ssub.s32 %s13, 2
      // Predicated region
      $region53: #{double_conv.3} parent=51 // pred_check
        %p467 = pneg %p152
      $region54: #{double_conv.3} parent=51 // pred_check_branch
        %469 = sbr.rel (%p467) target = $region56
      $region55: #{double_conv.3} parent=51 // pred_region
        %p470 = scmp.lt.s32.totalorder %s19, 1
        %s471 = scalar_select %p470, %s19, 1
        %s472 = smul.addr %s471, 2
        %s473 = smul.addr %s472, 4
        %s474 = scalar_lea.vmem %s5, %s473
      $region56: #{double_conv.3} parent=51 // pred_fallthru
        _
      // Predicated region
      $region57: #{double_conv.3} parent=51 // pred_check
        %p475 = pneg %p178
      $region58: #{double_conv.3} parent=51 // pred_check_branch
        %477 = sbr.rel (%p475) target = $region60
      $region59: #{double_conv.3} parent=51 // pred_region
        %p478 = scmp.lt.s32.totalorder %s19, 1
        %s479 = scalar_select %p478, %s19, 1
        %s480 = smul.addr %s479, 2
        %s481 = smul.addr %s480, 8
        %s482 = scalar_lea.vmem %s6, %s481
      $region60: #{double_conv.3} parent=51 // pred_fallthru
        _
    $region52: #{double_conv.3} parent=5 // pred_fallthru
      _
  $region6: #{double_conv.3} parent=0 // loop_footer
    %s17 = sadd.s32 1, %s13
  $region7: #{double_conv.3} parent=0 // loop_footer_branch
    %12 = sbr.rel target = $region3
  $region8: #{double_conv.3} parent=0 // loop_exit
    _

</llo_original>
